<compile_context>
chip_gen: v7x
topology: tpu7x:2x2x1
jax: 0.10.0
libtpu: 0.0.40
codegen_flags: <defaults>
</compile_context>

<pallas_src>
import jax
import jax.numpy as jnp
from jax.experimental import pallas as pl
from jax.experimental.pallas import tpu as pltpu


def _round_up(a, m):
    return ((a + m - 1) // m) * m


def _make_disc_kernel(num_layers):
    """Kernel for an MLP with `num_layers` hidden Linear+LeakyReLU blocks
    followed by a final Linear(->1) + Sigmoid, all on VMEM-resident tiles."""

    def kernel(x_ref, *refs):
        # refs = (w0, b0, w1, b1, ..., wL, bL, out_ref)
        out_ref = refs[-1]
        params = refs[:-1]

        h = x_ref[...]                            # bf16 (TB, emb_dim)
        for i in range(num_layers + 1):
            w = params[2 * i][...]                # bf16 (in_dim, out_dim)
            b = params[2 * i + 1][...]            # f32  (1, out_dim)
            # MXU matmul in bf16 with f32 accumulation; bias add in f32.
            h = jnp.dot(h.astype(jnp.bfloat16), w,
                        preferred_element_type=jnp.float32) + b
            if i < num_layers:
                # LeakyReLU(0.2): mul+max (2 VALU ops) instead of cmp+select+mul.
                h = jnp.maximum(h, 0.2 * h)
        # Sigmoid (EUP exp), f32.
        out_ref[...] = 1.0 / (1.0 + jnp.exp(-h))

    return kernel


def _build_pallas_fn(num_layers, B_pad, TB, emb_dim, weight_shapes, bias_shapes,
                     single_buffer_params):
    kernel = _make_disc_kernel(num_layers)
    grid = (pl.cdiv(B_pad, TB),)

    def _const_spec(shape):
        # Constant block index -> Pallas skips re-DMA across grid steps;
        # Buffered(1) additionally drops the second (useless) VMEM buffer.
        if single_buffer_params:
            return pl.BlockSpec(shape, lambda i: (0,) * len(shape),
                                pipeline_mode=pl.Buffered(1))
        return pl.BlockSpec(shape, lambda i: (0,) * len(shape))

    in_specs = [pl.BlockSpec((TB, emb_dim), lambda i: (i, 0))]   # streamed x
    for ws, bs in zip(weight_shapes, bias_shapes):
        in_specs.append(_const_spec(ws))
        in_specs.append(_const_spec(bs))

    out_specs = pl.BlockSpec((TB, 1), lambda i: (i, 0))
    out_shape = jax.ShapeDtypeStruct((B_pad, 1), jnp.float32)

    # VMEM residency estimate (bytes): streamed x/out double-buffered, params
    # single- or double-buffered depending on mode, plus generous headroom.
    param_buffers = 1 if single_buffer_params else 2
    x_bytes = 2 * TB * emb_dim * 2                          # bf16, 2 buffers
    o_bytes = 2 * TB * 1 * 4                                # f32, 2 buffers
    w_bytes = sum(s[0] * s[1] * 2 for s in weight_shapes)   # bf16
    b_bytes = sum(s[0] * s[1] * 4 for s in bias_shapes)     # f32
    vmem_needed = x_bytes + o_bytes + param_buffers * (w_bytes + b_bytes)
    vmem_limit = int(min(100 * 2**20,
                         max(16 * 2**20, 1.5 * vmem_needed + 4 * 2**20)))

    return pl.pallas_call(
        kernel,
        out_shape=out_shape,
        grid=grid,
        in_specs=in_specs,
        out_specs=out_specs,
        compiler_params=pltpu.CompilerParams(
            dimension_semantics=("parallel",),   # v7x: shard batch tiles over 2 TCs
            vmem_limit_bytes=vmem_limit,
        ),
    )


def discriminator_forward(x, weights, biases, *, tile_b=256):
    """x: (B, emb_dim) float32. weights[i]: (in_dim_i, out_dim_i), biases[i]: (out_dim_i,).
    Returns (probs of shape (B,), 0) exactly like the PyTorch module (eval mode)."""
    B, emb_dim = x.shape
    num_layers = len(weights) - 1
    assert weights[0].shape[0] == emb_dim
    assert weights[-1].shape[1] == 1

    # Batch tile: stream x/out over the grid; pad B to a multiple of the tile.
    TB = min(tile_b, _round_up(B, 8))
    B_pad = _round_up(B, TB)
    x_p = x if B_pad == B else jnp.pad(x, ((0, B_pad - B), (0, 0)))

    # bf16 operands for the MXU (halves weight VMEM + HBM bytes); bias stays f32.
    x_bf16 = x_p.astype(jnp.bfloat16)
    weights_bf16 = [w.astype(jnp.bfloat16) for w in weights]
    biases_2d = [b.reshape(1, -1).astype(jnp.float32) for b in biases]

    args = [x_bf16]
    for w, b in zip(weights_bf16, biases_2d):
        args.append(w)
        args.append(b)

    weight_shapes = [w.shape for w in weights_bf16]
    bias_shapes = [b.shape for b in biases_2d]

    try:
        fn = _build_pallas_fn(num_layers, B_pad, TB, emb_dim, weight_shapes,
                              bias_shapes, single_buffer_params=True)
        probs = fn(*args)                 # (B_pad, 1)
    except Exception:
        # Fallback if single-buffered resident params (pl.Buffered(1)) is not
        # supported by the installed JAX: default double buffering.
        fn = _build_pallas_fn(num_layers, B_pad, TB, emb_dim, weight_shapes,
                              bias_shapes, single_buffer_params=False)
        probs = fn(*args)

    return probs[:B].reshape(-1), 0       # matches `return (self.layers(x).view(-1), 0)`


def init_params(key, emb_dim, dis_layers, dis_hid_dim):
    """Deterministic init matching nn.Linear's default U(-1/sqrt(fan_in), 1/sqrt(fan_in))."""
    weights, biases = [], []
    for i in range(dis_layers + 1):
        in_dim = emb_dim if i == 0 else dis_hid_dim
        out_dim = 1 if i == dis_layers else dis_hid_dim
        key, kw, kb = jax.random.split(key, 3)
        bound = 1.0 / jnp.sqrt(jnp.float32(in_dim))
        # Stored as (in_dim, out_dim) — transpose of PyTorch's (out_dim, in_dim).
        w = jax.random.uniform(kw, (in_dim, out_dim), jnp.float32, -bound, bound)
        b = jax.random.uniform(kb, (out_dim,), jnp.float32, -bound, bound)
        weights.append(w)
        biases.append(b)
    return weights, biases


def reference_forward(x, weights, biases, *, matmul_dtype=None):
    """Pure-JAX reference (eval-mode). If matmul_dtype is given, matmul operands
    are cast to it (mimicking the kernel's bf16 MXU path) with f32 accumulation."""
    n = len(weights) - 1
    h = x.astype(jnp.float32)
    for i, (w, b) in enumerate(zip(weights, biases)):
        if matmul_dtype is not None:
            h = jnp.dot(h.astype(matmul_dtype), w.astype(matmul_dtype),
                        preferred_element_type=jnp.float32)
        else:
            h = jnp.dot(h, w, preferred_element_type=jnp.float32)
        h = h + b.astype(jnp.float32)
        if i < n:
            h = jnp.maximum(h, 0.2 * h)
    return (1.0 / (1.0 + jnp.exp(-h))).reshape(-1)


if __name__ == "__main__":
    key = jax.random.PRNGKey(0)

    # Small shapes consistent with the module: 2-D input (batch, emb_dim).
    configs = [
        dict(B=8, emb_dim=32, dis_layers=2, dis_hid_dim=128),
        dict(B=13, emb_dim=32, dis_layers=2, dis_hid_dim=128),  # exercises batch padding
    ]

    for cfg in configs:
        key, kx, kp = jax.random.split(key, 3)
        x = jax.random.normal(kx, (cfg["B"], cfg["emb_dim"]), dtype=jnp.float32)
        weights, biases = init_params(kp, cfg["emb_dim"], cfg["dis_layers"],
                                      cfg["dis_hid_dim"])

        probs, zero = discriminator_forward(x, weights, biases)
        probs = jax.block_until_ready(probs)

        assert probs.shape == (cfg["B"],)
        assert zero == 0

        # Reference that mimics the kernel's bf16 matmul operands (tight check).
        ref_bf16 = reference_forward(x, weights, biases, matmul_dtype=jnp.bfloat16)
        # Full-f32 reference (semantic check; looser tolerance due to bf16 MXU operands).
        ref_f32 = reference_forward(x, weights, biases)

        assert jnp.allclose(probs, ref_bf16, atol=1e-4, rtol=1e-4), (probs, ref_bf16)
        assert jnp.allclose(probs, ref_f32, atol=2e-2, rtol=0.0), (probs, ref_f32)

    print("KERNEL_OK")
</pallas_src>

<mosaic_0001>
module attributes {stable_mosaic.version = 11 : i64} {
  func.func @kernel(%arg0: i32, %arg1: memref<8x32xbf16, #tpu.memory_space<vmem>>, %arg2: memref<32x128xbf16, #tpu.memory_space<vmem>>, %arg3: memref<1x128xf32, #tpu.memory_space<vmem>>, %arg4: memref<128x128xbf16, #tpu.memory_space<vmem>>, %arg5: memref<1x128xf32, #tpu.memory_space<vmem>>, %arg6: memref<128x1xbf16, #tpu.memory_space<vmem>>, %arg7: memref<1x1xf32, #tpu.memory_space<vmem>>, %arg8: memref<8x1xf32, #tpu.memory_space<vmem>>) attributes {dimension_semantics = [#tpu.dimension_semantics<parallel>], iteration_bounds = array<i64: 1>, scalar_prefetch = 0 : i64, scratch_operands = 0 : i64, tpu.core_type = #tpu.core_type<tc>, window_params = [{transform_indices = @transform_0, window_bounds = array<i64: 8, 32>}, {pipeline_mode = #tpu.pipeline_mode<synchronous>, transform_indices = @transform_1, window_bounds = array<i64: 32, 128>}, {pipeline_mode = #tpu.pipeline_mode<synchronous>, transform_indices = @transform_2, window_bounds = array<i64: 1, 128>}, {pipeline_mode = #tpu.pipeline_mode<synchronous>, transform_indices = @transform_3, window_bounds = array<i64: 128, 128>}, {pipeline_mode = #tpu.pipeline_mode<synchronous>, transform_indices = @transform_4, window_bounds = array<i64: 1, 128>}, {pipeline_mode = #tpu.pipeline_mode<synchronous>, transform_indices = @transform_5, window_bounds = array<i64: 128, 1>}, {pipeline_mode = #tpu.pipeline_mode<synchronous>, transform_indices = @transform_6, window_bounds = array<i64: 1, 1>}, {transform_indices = @transform_7, window_bounds = array<i64: 8, 1>}]} {
    %c0 = arith.constant 0 : index
    %c0_0 = arith.constant 0 : index
    %0 = vector.load %arg1[%c0, %c0_0] : memref<8x32xbf16, #tpu.memory_space<vmem>>, vector<8x32xbf16>
    %c0_1 = arith.constant 0 : index
    %c0_2 = arith.constant 0 : index
    %1 = vector.load %arg2[%c0_1, %c0_2] : memref<32x128xbf16, #tpu.memory_space<vmem>>, vector<32x128xbf16>
    %c0_3 = arith.constant 0 : index
    %c0_4 = arith.constant 0 : index
    %2 = vector.load %arg3[%c0_3, %c0_4] : memref<1x128xf32, #tpu.memory_space<vmem>>, vector<1x128xf32>
    %cst = arith.constant dense<0.000000e+00> : vector<8x128xf32>
    %3 = tpu.matmul %0, %1, %cst {dimension_numbers = #tpu.dot_dimension_numbers<[1], [0], [0], [1], [0, 0, 1, 1], [], []>} : vector<8x32xbf16>, vector<32x128xbf16>, vector<8x128xf32> -> vector<8x128xf32>
    %4 = vector.broadcast %2 : vector<1x128xf32> to vector<8x128xf32>
    %5 = arith.addf %3, %4 : vector<8x128xf32>
    %cst_5 = arith.constant 2.000000e-01 : f32
    %6 = vector.broadcast %cst_5 : f32 to vector<8x128xf32>
    %7 = arith.mulf %6, %5 : vector<8x128xf32>
    %8 = arith.maximumf %5, %7 : vector<8x128xf32>
    %c0_6 = arith.constant 0 : index
    %c0_7 = arith.constant 0 : index
    %9 = vector.load %arg4[%c0_6, %c0_7] : memref<128x128xbf16, #tpu.memory_space<vmem>>, vector<128x128xbf16>
    %c0_8 = arith.constant 0 : index
    %c0_9 = arith.constant 0 : index
    %10 = vector.load %arg5[%c0_8, %c0_9] : memref<1x128xf32, #tpu.memory_space<vmem>>, vector<1x128xf32>
    %11 = arith.truncf %8 : vector<8x128xf32> to vector<8x128xbf16>
    %cst_10 = arith.constant dense<0.000000e+00> : vector<8x128xf32>
    %12 = tpu.matmul %11, %9, %cst_10 {dimension_numbers = #tpu.dot_dimension_numbers<[1], [0], [0], [1], [0, 0, 1, 1], [], []>} : vector<8x128xbf16>, vector<128x128xbf16>, vector<8x128xf32> -> vector<8x128xf32>
    %13 = vector.broadcast %10 : vector<1x128xf32> to vector<8x128xf32>
    %14 = arith.addf %12, %13 : vector<8x128xf32>
    %cst_11 = arith.constant 2.000000e-01 : f32
    %15 = vector.broadcast %cst_11 : f32 to vector<8x128xf32>
    %16 = arith.mulf %15, %14 : vector<8x128xf32>
    %17 = arith.maximumf %14, %16 : vector<8x128xf32>
    %c0_12 = arith.constant 0 : index
    %c0_13 = arith.constant 0 : index
    %18 = vector.load %arg6[%c0_12, %c0_13] : memref<128x1xbf16, #tpu.memory_space<vmem>>, vector<128x1xbf16>
    %c0_14 = arith.constant 0 : index
    %c0_15 = arith.constant 0 : index
    %19 = vector.load %arg7[%c0_14, %c0_15] : memref<1x1xf32, #tpu.memory_space<vmem>>, vector<1x1xf32>
    %20 = arith.truncf %17 : vector<8x128xf32> to vector<8x128xbf16>
    %cst_16 = arith.constant dense<0.000000e+00> : vector<8x1xf32>
    %21 = tpu.matmul %20, %18, %cst_16 {dimension_numbers = #tpu.dot_dimension_numbers<[1], [0], [0], [1], [0, 0, 1, 1], [], []>} : vector<8x128xbf16>, vector<128x1xbf16>, vector<8x1xf32> -> vector<8x1xf32>
    %22 = vector.broadcast %19 : vector<1x1xf32> to vector<8x1xf32>
    %23 = arith.addf %21, %22 : vector<8x1xf32>
    %cst_17 = arith.constant 0.000000e+00 : f32
    %24 = vector.broadcast %cst_17 : f32 to vector<8x1xf32>
    %25 = arith.subf %24, %23 : vector<8x1xf32>
    %26 = math.exp %25 : vector<8x1xf32>
    %cst_18 = arith.constant 1.000000e+00 : f32
    %27 = vector.broadcast %cst_18 : f32 to vector<8x1xf32>
    %28 = arith.addf %27, %26 : vector<8x1xf32>
    %cst_19 = arith.constant 1.000000e+00 : f32
    %29 = vector.broadcast %cst_19 : f32 to vector<8x1xf32>
    %30 = arith.divf %29, %28 : vector<8x1xf32>
    %c0_20 = arith.constant 0 : index
    %c0_21 = arith.constant 0 : index
    %31 = vector.load %arg8[%c0_20, %c0_21] : memref<8x1xf32, #tpu.memory_space<vmem>>, vector<8x1xf32>
    tpu.vector_store %arg8[%c0_20, %c0_21], %30 {strides = array<i32>} : memref<8x1xf32, #tpu.memory_space<vmem>>, vector<8x1xf32>,
    return
  }
  func.func @transform_0(%arg0: i32) -> (i32, i32) {
    %c0_i32 = arith.constant 0 : i32
    %c0_i32_0 = arith.constant 0 : i32
    return %arg0, %c0_i32 : i32, i32
  }
  func.func @transform_1(%arg0: i32) -> (i32, i32) {
    %c0_i32 = arith.constant 0 : i32
    %c0_i32_0 = arith.constant 0 : i32
    %c0_i32_1 = arith.constant 0 : i32
    return %c0_i32, %c0_i32_0 : i32, i32
  }
  func.func @transform_2(%arg0: i32) -> (i32, i32) {
    %c0_i32 = arith.constant 0 : i32
    %c0_i32_0 = arith.constant 0 : i32
    %c0_i32_1 = arith.constant 0 : i32
    return %c0_i32, %c0_i32_0 : i32, i32
  }
  func.func @transform_3(%arg0: i32) -> (i32, i32) {
    %c0_i32 = arith.constant 0 : i32
    %c0_i32_0 = arith.constant 0 : i32
    %c0_i32_1 = arith.constant 0 : i32
    return %c0_i32, %c0_i32_0 : i32, i32
  }
  func.func @transform_4(%arg0: i32) -> (i32, i32) {
    %c0_i32 = arith.constant 0 : i32
    %c0_i32_0 = arith.constant 0 : i32
    %c0_i32_1 = arith.constant 0 : i32
    return %c0_i32, %c0_i32_0 : i32, i32
  }
  func.func @transform_5(%arg0: i32) -> (i32, i32) {
    %c0_i32 = arith.constant 0 : i32
    %c0_i32_0 = arith.constant 0 : i32
    %c0_i32_1 = arith.constant 0 : i32
    return %c0_i32, %c0_i32_0 : i32, i32
  }
  func.func @transform_6(%arg0: i32) -> (i32, i32) {
    %c0_i32 = arith.constant 0 : i32
    %c0_i32_0 = arith.constant 0 : i32
    %c0_i32_1 = arith.constant 0 : i32
    return %c0_i32, %c0_i32_0 : i32, i32
  }
  func.func @transform_7(%arg0: i32) -> (i32, i32) {
    %c0_i32 = arith.constant 0 : i32
    %c0_i32_0 = arith.constant 0 : i32
    return %arg0, %c0_i32 : i32, i32
  }
}

module attributes {stable_mosaic.version = 11 : i64} {
  func.func @kernel(%arg0: i32, %arg1: memref<8x32xbf16, #tpu.memory_space<vmem>>, %arg2: memref<32x128xbf16, #tpu.memory_space<vmem>>, %arg3: memref<1x128xf32, #tpu.memory_space<vmem>>, %arg4: memref<128x128xbf16, #tpu.memory_space<vmem>>, %arg5: memref<1x128xf32, #tpu.memory_space<vmem>>, %arg6: memref<128x1xbf16, #tpu.memory_space<vmem>>, %arg7: memref<1x1xf32, #tpu.memory_space<vmem>>, %arg8: memref<8x1xf32, #tpu.memory_space<vmem>>) attributes {dimension_semantics = [#tpu.dimension_semantics<parallel>], iteration_bounds = array<i64: 1>, scalar_prefetch = 0 : i64, scratch_operands = 0 : i64, tpu.core_type = #tpu.core_type<tc>, window_params = [{transform_indices = @transform_0, window_bounds = array<i64: 8, 32>}, {pipeline_mode = #tpu.pipeline_mode<synchronous>, transform_indices = @transform_1, window_bounds = array<i64: 32, 128>}, {pipeline_mode = #tpu.pipeline_mode<synchronous>, transform_indices = @transform_2, window_bounds = array<i64: 1, 128>}, {pipeline_mode = #tpu.pipeline_mode<synchronous>, transform_indices = @transform_3, window_bounds = array<i64: 128, 128>}, {pipeline_mode = #tpu.pipeline_mode<synchronous>, transform_indices = @transform_4, window_bounds = array<i64: 1, 128>}, {pipeline_mode = #tpu.pipeline_mode<synchronous>, transform_indices = @transform_5, window_bounds = array<i64: 128, 1>}, {pipeline_mode = #tpu.pipeline_mode<synchronous>, transform_indices = @transform_6, window_bounds = array<i64: 1, 1>}, {transform_indices = @transform_7, window_bounds = array<i64: 8, 1>}]} {
    %c0 = arith.constant 0 : index
    %c0_0 = arith.constant 0 : index
    %0 = vector.load %arg1[%c0, %c0_0] : memref<8x32xbf16, #tpu.memory_space<vmem>>, vector<8x32xbf16>
    %c0_1 = arith.constant 0 : index
    %c0_2 = arith.constant 0 : index
    %1 = vector.load %arg2[%c0_1, %c0_2] : memref<32x128xbf16, #tpu.memory_space<vmem>>, vector<32x128xbf16>
    %c0_3 = arith.constant 0 : index
    %c0_4 = arith.constant 0 : index
    %2 = vector.load %arg3[%c0_3, %c0_4] : memref<1x128xf32, #tpu.memory_space<vmem>>, vector<1x128xf32>
    %cst = arith.constant dense<0.000000e+00> : vector<8x128xf32>
    %3 = tpu.matmul %0, %1, %cst {dimension_numbers = #tpu.dot_dimension_numbers<[1], [0], [0], [1], [0, 0, 1, 1], [], []>} : vector<8x32xbf16>, vector<32x128xbf16>, vector<8x128xf32> -> vector<8x128xf32>
    %4 = vector.broadcast %2 : vector<1x128xf32> to vector<8x128xf32>
    %5 = arith.addf %3, %4 : vector<8x128xf32>
    %cst_5 = arith.constant 2.000000e-01 : f32
    %6 = vector.broadcast %cst_5 : f32 to vector<8x128xf32>
    %7 = arith.mulf %6, %5 : vector<8x128xf32>
    %8 = arith.maximumf %5, %7 : vector<8x128xf32>
    %c0_6 = arith.constant 0 : index
    %c0_7 = arith.constant 0 : index
    %9 = vector.load %arg4[%c0_6, %c0_7] : memref<128x128xbf16, #tpu.memory_space<vmem>>, vector<128x128xbf16>
    %c0_8 = arith.constant 0 : index
    %c0_9 = arith.constant 0 : index
    %10 = vector.load %arg5[%c0_8, %c0_9] : memref<1x128xf32, #tpu.memory_space<vmem>>, vector<1x128xf32>
    %11 = arith.truncf %8 : vector<8x128xf32> to vector<8x128xbf16>
    %cst_10 = arith.constant dense<0.000000e+00> : vector<8x128xf32>
    %12 = tpu.matmul %11, %9, %cst_10 {dimension_numbers = #tpu.dot_dimension_numbers<[1], [0], [0], [1], [0, 0, 1, 1], [], []>} : vector<8x128xbf16>, vector<128x128xbf16>, vector<8x128xf32> -> vector<8x128xf32>
    %13 = vector.broadcast %10 : vector<1x128xf32> to vector<8x128xf32>
    %14 = arith.addf %12, %13 : vector<8x128xf32>
    %cst_11 = arith.constant 2.000000e-01 : f32
    %15 = vector.broadcast %cst_11 : f32 to vector<8x128xf32>
    %16 = arith.mulf %15, %14 : vector<8x128xf32>
    %17 = arith.maximumf %14, %16 : vector<8x128xf32>
    %c0_12 = arith.constant 0 : index
    %c0_13 = arith.constant 0 : index
    %18 = vector.load %arg6[%c0_12, %c0_13] : memref<128x1xbf16, #tpu.memory_space<vmem>>, vector<128x1xbf16>
    %c0_14 = arith.constant 0 : index
    %c0_15 = arith.constant 0 : index
    %19 = vector.load %arg7[%c0_14, %c0_15] : memref<1x1xf32, #tpu.memory_space<vmem>>, vector<1x1xf32>
    %20 = arith.truncf %17 : vector<8x128xf32> to vector<8x128xbf16>
    %cst_16 = arith.constant dense<0.000000e+00> : vector<8x1xf32>
    %21 = tpu.matmul %20, %18, %cst_16 {dimension_numbers = #tpu.dot_dimension_numbers<[1], [0], [0], [1], [0, 0, 1, 1], [], []>} : vector<8x128xbf16>, vector<128x1xbf16>, vector<8x1xf32> -> vector<8x1xf32>
    %22 = vector.broadcast %19 : vector<1x1xf32> to vector<8x1xf32>
    %23 = arith.addf %21, %22 : vector<8x1xf32>
    %cst_17 = arith.constant 0.000000e+00 : f32
    %24 = vector.broadcast %cst_17 : f32 to vector<8x1xf32>
    %25 = arith.subf %24, %23 : vector<8x1xf32>
    %26 = math.exp %25 : vector<8x1xf32>
    %cst_18 = arith.constant 1.000000e+00 : f32
    %27 = vector.broadcast %cst_18 : f32 to vector<8x1xf32>
    %28 = arith.addf %27, %26 : vector<8x1xf32>
    %cst_19 = arith.constant 1.000000e+00 : f32
    %29 = vector.broadcast %cst_19 : f32 to vector<8x1xf32>
    %30 = arith.divf %29, %28 : vector<8x1xf32>
    %c0_20 = arith.constant 0 : index
    %c0_21 = arith.constant 0 : index
    %31 = vector.load %arg8[%c0_20, %c0_21] : memref<8x1xf32, #tpu.memory_space<vmem>>, vector<8x1xf32>
    tpu.vector_store %arg8[%c0_20, %c0_21], %30 {strides = array<i32>} : memref<8x1xf32, #tpu.memory_space<vmem>>, vector<8x1xf32>,
    return
  }
  func.func @transform_0(%arg0: i32) -> (i32, i32) {
    %c0_i32 = arith.constant 0 : i32
    %c0_i32_0 = arith.constant 0 : i32
    return %arg0, %c0_i32 : i32, i32
  }
  func.func @transform_1(%arg0: i32) -> (i32, i32) {
    %c0_i32 = arith.constant 0 : i32
    %c0_i32_0 = arith.constant 0 : i32
    %c0_i32_1 = arith.constant 0 : i32
    return %c0_i32, %c0_i32_0 : i32, i32
  }
  func.func @transform_2(%arg0: i32) -> (i32, i32) {
    %c0_i32 = arith.constant 0 : i32
    %c0_i32_0 = arith.constant 0 : i32
    %c0_i32_1 = arith.constant 0 : i32
    return %c0_i32, %c0_i32_0 : i32, i32
  }
  func.func @transform_3(%arg0: i32) -> (i32, i32) {
    %c0_i32 = arith.constant 0 : i32
    %c0_i32_0 = arith.constant 0 : i32
    %c0_i32_1 = arith.constant 0 : i32
    return %c0_i32, %c0_i32_0 : i32, i32
  }
  func.func @transform_4(%arg0: i32) -> (i32, i32) {
    %c0_i32 = arith.constant 0 : i32
    %c0_i32_0 = arith.constant 0 : i32
    %c0_i32_1 = arith.constant 0 : i32
    return %c0_i32, %c0_i32_0 : i32, i32
  }
  func.func @transform_5(%arg0: i32) -> (i32, i32) {
    %c0_i32 = arith.constant 0 : i32
    %c0_i32_0 = arith.constant 0 : i32
    %c0_i32_1 = arith.constant 0 : i32
    return %c0_i32, %c0_i32_0 : i32, i32
  }
  func.func @transform_6(%arg0: i32) -> (i32, i32) {
    %c0_i32 = arith.constant 0 : i32
    %c0_i32_0 = arith.constant 0 : i32
    %c0_i32_1 = arith.constant 0 : i32
    return %c0_i32, %c0_i32_0 : i32, i32
  }
  func.func @transform_7(%arg0: i32) -> (i32, i32) {
    %c0_i32 = arith.constant 0 : i32
    %c0_i32_0 = arith.constant 0 : i32
    return %arg0, %c0_i32 : i32, i32
  }
}

</mosaic_0001>

<llo_original>
// kernel: tpu_custom_call.1
$region0: #{tpu_custom_call.1}
  #allocation0 [shape = 'u32[]', space=smem, size = 0x4, offset = 0x4, fixed_abs, tag = 'smem constant byte address 0x4 - core index']
  #allocation1 [shape = 'u32[144,128]{1,0:T(1,128)}', space=vmem, size = 0x12000, scoped, tag = 'internal scratch']
  #allocation2 [shape = 'f32[1,1]{1,0:T(1,128)S(1)}', space=vmem, size = 0x200, scoped, tag = 'scoped memory for tpu_custom_call.1']
  %s0 = inlined_call_operand.hbm [shape: bf16[8,32], index: 0, kind: input, shape index: {}]
  %s1 = inlined_call_operand.vmem [shape: bf16[32,128], index: 1, kind: input, shape index: {}]
  %s2 = inlined_call_operand.hbm [shape: f32[1,128], index: 2, kind: input, shape index: {}]
  %s3 = inlined_call_operand.vmem [shape: bf16[128,128], index: 3, kind: input, shape index: {}]
  %s4 = inlined_call_operand.vmem [shape: f32[1,128], index: 4, kind: input, shape index: {}]
  %s5 = inlined_call_operand.vmem [shape: bf16[128,1], index: 5, kind: input, shape index: {}]
  %s6 = inlined_call_operand.<no memory space> [shape: f32[1,1], index: 6, kind: input, shape index: {}]
  %s7 = inlined_call_operand.vmem [shape: f32[8,1], index: 7, kind: output, shape index: {}]
  %s8 = sld [smem:[#allocation0]]
  $region46: #{tpu_custom_call.1} parent=0
    _
  %s10 = ssub.s32 1, %s8
  %s11 = scalar_select 0, %s10, %s8
  %v12 = vstv %s6
  %13 = vst [vmem:[#allocation2] sm:$0x1] %v12
  $region1: #{tpu_custom_call.1} parent=0
    #allocation3 [shape = 'u8[2048]{0}', space=vmem, size = 0x800, scoped, tag = 'input window, operand 0, single buffered']
    #allocation4 [shape = 's32[1]{0}', space=sflag, size = 0x4, scoped, tag = 'scoped memory for tpu_custom_call.1']
    #allocation5 [shape = 'u8[512]{0}', space=vmem, size = 0x400, scoped, tag = 'input window, operand 2, single buffered']
    #allocation6 [shape = 's32[1]{0}', space=sflag, size = 0x4, scoped, tag = 'scoped memory for tpu_custom_call.1']
    %14 = vsyncpa [#allocation4], 0
    %15 = vsyncpa [#allocation6], 0
    // Predicated region
    $region2: #{tpu_custom_call.1} parent=1 // pred_check
      _
    $region3: #{tpu_custom_call.1} parent=1 // pred_check_branch
      %17 = sbr.rel (0) target = $region5
    $region4: #{tpu_custom_call.1} parent=1 // pred_region
      %s19 = ssub.s32 64, 64
      %20 = vsyncadd [#allocation4], %s19
      %s22 = sshll.u32 [#allocation3], 4
      %s23 = int_to_ptr.vmem [resolvable:$true] %s22
      %25 = dma.hbm_to_vmem [thread:$0]  %s0, 64, %s23, [#allocation4]
    $region5: #{tpu_custom_call.1} parent=1 // pred_fallthru
      _
    // Predicated region
    $region6: #{tpu_custom_call.1} parent=1 // pred_check
      _
    $region7: #{tpu_custom_call.1} parent=1 // pred_check_branch
      %27 = sbr.rel (0) target = $region9
    $region8: #{tpu_custom_call.1} parent=1 // pred_region
      _
    $region9: #{tpu_custom_call.1} parent=1 // pred_fallthru
      _
    // Predicated region
    $region10: #{tpu_custom_call.1} parent=1 // pred_check
      _
    $region11: #{tpu_custom_call.1} parent=1 // pred_check_branch
      %29 = sbr.rel (0) target = $region13
    $region12: #{tpu_custom_call.1} parent=1 // pred_region
      %s31 = ssub.s32 16, 16
      %32 = vsyncadd [#allocation6], %s31
      %s34 = sshll.u32 [#allocation5], 4
      %s35 = int_to_ptr.vmem [resolvable:$true] %s34
      %37 = dma.hbm_to_vmem [thread:$0]  %s2, 16, %s35, [#allocation6]
    $region13: #{tpu_custom_call.1} parent=1 // pred_fallthru
      _
    // Predicated region
    $region14: #{tpu_custom_call.1} parent=1 // pred_check
      _
    $region15: #{tpu_custom_call.1} parent=1 // pred_check_branch
      %39 = sbr.rel (0) target = $region17
    $region16: #{tpu_custom_call.1} parent=1 // pred_region
      _
    $region17: #{tpu_custom_call.1} parent=1 // pred_fallthru
      _
    // Predicated region
    $region18: #{tpu_custom_call.1} parent=1 // pred_check
      _
    $region19: #{tpu_custom_call.1} parent=1 // pred_check_branch
      %41 = sbr.rel (0) target = $region21
    $region20: #{tpu_custom_call.1} parent=1 // pred_region
      _
    $region21: #{tpu_custom_call.1} parent=1 // pred_fallthru
      _
    // Predicated region
    $region22: #{tpu_custom_call.1} parent=1 // pred_check
      _
    $region23: #{tpu_custom_call.1} parent=1 // pred_check_branch
      %43 = sbr.rel (0) target = $region25
    $region24: #{tpu_custom_call.1} parent=1 // pred_region
      _
    $region25: #{tpu_custom_call.1} parent=1 // pred_fallthru
      _
    // Predicated region
    $region26: #{tpu_custom_call.1} parent=1 // pred_check
      _
    $region27: #{tpu_custom_call.1} parent=1 // pred_check_branch
      %45 = sbr.rel (0) target = $region29
    $region28: #{tpu_custom_call.1} parent=1 // pred_region
      _
    $region29: #{tpu_custom_call.1} parent=1 // pred_fallthru
      _
    // Predicated region
    $region30: #{tpu_custom_call.1} parent=1 // pred_check
      _
    $region31: #{tpu_custom_call.1} parent=1 // pred_check_branch
      %47 = sbr.rel (0) target = $region33
    $region32: #{tpu_custom_call.1} parent=1 // pred_region
      %48 = dma.done [#allocation4], 64
    $region33: #{tpu_custom_call.1} parent=1 // pred_fallthru
      _
    // Predicated region
    $region34: #{tpu_custom_call.1} parent=1 // pred_check
      _
    $region35: #{tpu_custom_call.1} parent=1 // pred_check_branch
      %50 = sbr.rel (0) target = $region37
    $region36: #{tpu_custom_call.1} parent=1 // pred_region
      %51 = dma.done [#allocation6], 16
    $region37: #{tpu_custom_call.1} parent=1 // pred_fallthru
      _
    %v53 = vld [vmem:[#allocation3] sm:$0xf]
    %v54 = vld [vmem:[%s1] sm:$0xf]
    %v55 = vld [vmem:[%s1 + $0x4] sm:$0xf]
    %v56 = vld [vmem:[%s1 + $0x8] sm:$0xf]
    %v57 = vld [vmem:[%s1 + $0xc] sm:$0xf]
    %v58 = vld [vmem:[#allocation5] sm:$0x1]
    %v60 = vlaneseq
    %v61 = vshrl.u32 %v60, 7
    %v62 = vsub.s32 0, %v61
    %v63 = vrot.slane %v58, %v62
    %v69 = vunpack.c.l.b16 %v54
    %v70 = vunpack.c.l.b16 %v55
    %v71 = vunpack.c.l.b16 %v56
    %v72 = vunpack.c.l.b16 %v57
    %v73 = vpack.c.b16 %v70, %v69
    %v74 = vpack.c.b16 %v72, %v71
    %vm77 = vcmask 261120
    %v79 = vsel %vm77, %v53, 0
    %81 = vmatprep.subr.bf16.mxu0 0
    %82 = vmatpush1.bf16.msra.mxu0 %v73
    %83 = vmatprep.subr.bf16.mxu0 0
    %84 = vmatpush1.bf16.msra.mxu0 %v74
    %85 = vmatprep.subr.bf16.mxu0 0
    %86 = vmatpush1.bf16.msra.mxu0 0
    %87 = vmatprep.subr.bf16.mxu0 0
    %88 = vmatpush1.bf16.msra.mxu0 0
    %89 = vmatprep.subr.bf16.mxu0 0
    %90 = vmatpush1.bf16.msra.mxu0 0
    %91 = vmatprep.subr.bf16.mxu0 0
    %92 = vmatpush1.bf16.msra.mxu0 0
    %93 = vmatprep.subr.bf16.mxu0 0
    %94 = vmatpush1.bf16.msra.mxu0 0
    %95 = vmatprep.subr.bf16.mxu0 0
    %96 = vmatpush1.bf16.msra.mxu0 0
    %97 = vmatprep.subr.bf16.mxu0 0
    %98 = vmatpush1.bf16.msra.mxu0 0
    %99 = vmatprep.subr.bf16.mxu0 0
    %100 = vmatpush1.bf16.msra.mxu0 0
    %101 = vmatprep.subr.bf16.mxu0 0
    %102 = vmatpush1.bf16.msra.mxu0 0
    %103 = vmatprep.subr.bf16.mxu0 0
    %104 = vmatpush1.bf16.msra.mxu0 0
    %105 = vmatprep.subr.bf16.mxu0 0
    %106 = vmatpush1.bf16.msra.mxu0 0
    %107 = vmatprep.subr.bf16.mxu0 0
    %108 = vmatpush1.bf16.msra.mxu0 0
    %109 = vmatprep.subr.bf16.mxu0 0
    %110 = vmatpush1.bf16.msra.mxu0 0
    %111 = vmatprep.subr.bf16.mxu0 0
    %112 = vmatpush1.bf16.msra.mxu0 0
    %113 = vmatprep.mubr.bf16.mxu0 0
    %114 = vmatmul.mubr.bf16.gmra.mrb[0].mxu0 %v79
    %v115 = vpop.f32.mrb[0].mxu0
    %v116 = vadd.f32 %v63, %v115
    %v117 = vpop.f32.mrb[0].mxu0
    %v118 = vpop.f32.mrb[0].mxu0
    %v119 = vpop.f32.mrb[0].mxu0
    %120 = vdwg.mxu0
    %v121 = vmul.f32 %v116, 0.2
    %v122 = vmax.f32 %v116, %v121
    %v123 = vld [vmem:[%s3] sm:$0xf]
    %v124 = vld [vmem:[%s3 + $0x4] sm:$0xf]
    %v125 = vld [vmem:[%s3 + $0x8] sm:$0xf]
    %v126 = vld [vmem:[%s3 + $0xc] sm:$0xf]
    %v127 = vld [vmem:[%s3 + $0x10] sm:$0xf]
    %v128 = vld [vmem:[%s3 + $0x14] sm:$0xf]
    %v129 = vld [vmem:[%s3 + $0x18] sm:$0xf]
    %v130 = vld [vmem:[%s3 + $0x1c] sm:$0xf]
    %v131 = vld [vmem:[%s3 + $0x20] sm:$0xf]
    %v132 = vld [vmem:[%s3 + $0x24] sm:$0xf]
    %v133 = vld [vmem:[%s3 + $0x28] sm:$0xf]
    %v134 = vld [vmem:[%s3 + $0x2c] sm:$0xf]
    %v135 = vld [vmem:[%s3 + $0x30] sm:$0xf]
    %v136 = vld [vmem:[%s3 + $0x34] sm:$0xf]
    %v137 = vld [vmem:[%s3 + $0x38] sm:$0xf]
    %v138 = vld [vmem:[%s3 + $0x3c] sm:$0xf]
    %v139 = vld [vmem:[%s4] sm:$0x1]
    %v140 = vpack.c.bf16 %v122, %v122
    %v142 = vlaneseq
    %v143 = vshrl.u32 %v142, 7
    %v144 = vsub.s32 0, %v143
    %v145 = vrot.slane %v139, %v144
    %v163 = vunpack.c.l.b16 %v123
    %v164 = vunpack.c.l.b16 %v124
    %v165 = vunpack.c.l.b16 %v125
    %v166 = vunpack.c.l.b16 %v126
    %v167 = vunpack.c.l.b16 %v127
    %v168 = vunpack.c.l.b16 %v128
    %v169 = vunpack.c.l.b16 %v129
    %v170 = vunpack.c.l.b16 %v130
    %v171 = vunpack.c.l.b16 %v131
    %v172 = vunpack.c.l.b16 %v132
    %v173 = vunpack.c.l.b16 %v133
    %v174 = vunpack.c.l.b16 %v134
    %v175 = vunpack.c.l.b16 %v135
    %v176 = vunpack.c.l.b16 %v136
    %v177 = vunpack.c.l.b16 %v137
    %v178 = vunpack.c.l.b16 %v138
    %v179 = vpack.c.b16 %v164, %v163
    %v180 = vpack.c.b16 %v166, %v165
    %v181 = vpack.c.b16 %v168, %v167
    %v182 = vpack.c.b16 %v170, %v169
    %v183 = vpack.c.b16 %v172, %v171
    %v184 = vpack.c.b16 %v174, %v173
    %v185 = vpack.c.b16 %v176, %v175
    %v186 = vpack.c.b16 %v178, %v177
    %195 = vmatprep.subr.bf16.mxu0 0
    %196 = vmatpush1.bf16.msra.mxu0 %v179
    %197 = vmatprep.subr.bf16.mxu0 0
    %198 = vmatpush1.bf16.msra.mxu0 %v180
    %199 = vmatprep.subr.bf16.mxu0 0
    %200 = vmatpush1.bf16.msra.mxu0 %v181
    %201 = vmatprep.subr.bf16.mxu0 0
    %202 = vmatpush1.bf16.msra.mxu0 %v182
    %203 = vmatprep.subr.bf16.mxu0 0
    %204 = vmatpush1.bf16.msra.mxu0 %v183
    %205 = vmatprep.subr.bf16.mxu0 0
    %206 = vmatpush1.bf16.msra.mxu0 %v184
    %207 = vmatprep.subr.bf16.mxu0 0
    %208 = vmatpush1.bf16.msra.mxu0 %v185
    %209 = vmatprep.subr.bf16.mxu0 0
    %210 = vmatpush1.bf16.msra.mxu0 %v186
    %211 = vmatprep.subr.bf16.mxu0 0
    %212 = vmatpush1.bf16.msra.mxu0 0
    %213 = vmatprep.subr.bf16.mxu0 0
    %214 = vmatpush1.bf16.msra.mxu0 0
    %215 = vmatprep.subr.bf16.mxu0 0
    %216 = vmatpush1.bf16.msra.mxu0 0
    %217 = vmatprep.subr.bf16.mxu0 0
    %218 = vmatpush1.bf16.msra.mxu0 0
    %219 = vmatprep.subr.bf16.mxu0 0
    %220 = vmatpush1.bf16.msra.mxu0 0
    %221 = vmatprep.subr.bf16.mxu0 0
    %222 = vmatpush1.bf16.msra.mxu0 0
    %223 = vmatprep.subr.bf16.mxu0 0
    %224 = vmatpush1.bf16.msra.mxu0 0
    %225 = vmatprep.subr.bf16.mxu0 0
    %226 = vmatpush1.bf16.msra.mxu0 0
    %227 = vmatprep.mubr.bf16.mxu0 0
    %228 = vmatmul.mubr.bf16.gmra.mrb[0].mxu0 %v140
    %v229 = vpop.f32.mrb[0].mxu0
    %v230 = vadd.f32 %v145, %v229
    %v231 = vpop.f32.mrb[0].mxu0
    %v232 = vpop.f32.mrb[0].mxu0
    %v233 = vpop.f32.mrb[0].mxu0
    %234 = vdwg.mxu0
    %v235 = vmul.f32 %v230, 0.2
    %v236 = vmax.f32 %v230, %v235
    %v237 = vld [vmem:[%s5] sm:$0xf]
    %v238 = vld [vmem:[%s5 + $0x4] sm:$0xf]
    %v239 = vld [vmem:[%s5 + $0x8] sm:$0xf]
    %v240 = vld [vmem:[%s5 + $0xc] sm:$0xf]
    %v241 = vld [vmem:[%s5 + $0x10] sm:$0xf]
    %v242 = vld [vmem:[%s5 + $0x14] sm:$0xf]
    %v243 = vld [vmem:[%s5 + $0x18] sm:$0xf]
    %v244 = vld [vmem:[%s5 + $0x1c] sm:$0xf]
    %v245 = vld [vmem:[%s5 + $0x20] sm:$0xf]
    %v246 = vld [vmem:[%s5 + $0x24] sm:$0xf]
    %v247 = vld [vmem:[%s5 + $0x28] sm:$0xf]
    %v248 = vld [vmem:[%s5 + $0x2c] sm:$0xf]
    %v249 = vld [vmem:[%s5 + $0x30] sm:$0xf]
    %v250 = vld [vmem:[%s5 + $0x34] sm:$0xf]
    %v251 = vld [vmem:[%s5 + $0x38] sm:$0xf]
    %v252 = vld [vmem:[%s5 + $0x3c] sm:$0xf]
    %v253 = vld [vmem:[#allocation2] sm:$0x1]
    %v254 = vpack.c.bf16 %v236, %v236
    %v256 = vlaneseq
    %v257 = vshrl.u32 %v256, 7
    %v258 = vsub.s32 0, %v257
    %v259 = vrot.slane %v253, %v258
    %v277 = vunpack.c.l.b16 %v237
    %v278 = vunpack.c.l.b16 %v238
    %v279 = vunpack.c.l.b16 %v239
    %v280 = vunpack.c.l.b16 %v240
    %v281 = vunpack.c.l.b16 %v241
    %v282 = vunpack.c.l.b16 %v242
    %v283 = vunpack.c.l.b16 %v243
    %v284 = vunpack.c.l.b16 %v244
    %v285 = vunpack.c.l.b16 %v245
    %v286 = vunpack.c.l.b16 %v246
    %v287 = vunpack.c.l.b16 %v247
    %v288 = vunpack.c.l.b16 %v248
    %v289 = vunpack.c.l.b16 %v249
    %v290 = vunpack.c.l.b16 %v250
    %v291 = vunpack.c.l.b16 %v251
    %v292 = vunpack.c.l.b16 %v252
    %v293 = vpack.c.b16 %v278, %v277
    %v294 = vpack.c.b16 %v280, %v279
    %v295 = vpack.c.b16 %v282, %v281
    %v296 = vpack.c.b16 %v284, %v283
    %v297 = vpack.c.b16 %v286, %v285
    %v298 = vpack.c.b16 %v288, %v287
    %v299 = vpack.c.b16 %v290, %v289
    %v300 = vpack.c.b16 %v292, %v291
    %309 = vmatprep.subr.bf16.mxu0 0
    %310 = vmatpush1.bf16.msra.mxu0 %v293
    %311 = vmatprep.subr.bf16.mxu0 0
    %312 = vmatpush1.bf16.msra.mxu0 %v294
    %313 = vmatprep.subr.bf16.mxu0 0
    %314 = vmatpush1.bf16.msra.mxu0 %v295
    %315 = vmatprep.subr.bf16.mxu0 0
    %316 = vmatpush1.bf16.msra.mxu0 %v296
    %317 = vmatprep.subr.bf16.mxu0 0
    %318 = vmatpush1.bf16.msra.mxu0 %v297
    %319 = vmatprep.subr.bf16.mxu0 0
    %320 = vmatpush1.bf16.msra.mxu0 %v298
    %321 = vmatprep.subr.bf16.mxu0 0
    %322 = vmatpush1.bf16.msra.mxu0 %v299
    %323 = vmatprep.subr.bf16.mxu0 0
    %324 = vmatpush1.bf16.msra.mxu0 %v300
    %325 = vmatprep.subr.bf16.mxu0 0
    %326 = vmatpush1.bf16.msra.mxu0 0
    %327 = vmatprep.subr.bf16.mxu0 0
    %328 = vmatpush1.bf16.msra.mxu0 0
    %329 = vmatprep.subr.bf16.mxu0 0
    %330 = vmatpush1.bf16.msra.mxu0 0
    %331 = vmatprep.subr.bf16.mxu0 0
    %332 = vmatpush1.bf16.msra.mxu0 0
    %333 = vmatprep.subr.bf16.mxu0 0
    %334 = vmatpush1.bf16.msra.mxu0 0
    %335 = vmatprep.subr.bf16.mxu0 0
    %336 = vmatpush1.bf16.msra.mxu0 0
    %337 = vmatprep.subr.bf16.mxu0 0
    %338 = vmatpush1.bf16.msra.mxu0 0
    %339 = vmatprep.subr.bf16.mxu0 0
    %340 = vmatpush1.bf16.msra.mxu0 0
    %341 = vmatprep.mubr.bf16.mxu0 0
    %342 = vmatmul.mubr.bf16.gmra.mrb[0].mxu0 %v254
    %v343 = vpop.f32.mrb[0].mxu0
    %v344 = vadd.f32 %v259, %v343
    %v345 = vpop.f32.mrb[0].mxu0
    %v346 = vpop.f32.mrb[0].mxu0
    %v347 = vpop.f32.mrb[0].mxu0
    %348 = vdwg.mxu0
    %v349 = vsub.f32 0.0, %v344
    %v350 = vmul.f32 %v349, 1.442695
    %v351 = vpow.pop %v350
    %v352 = vadd.f32 %v351, 1.0
    %v353 = vrcp.pop %v352
    %v354 = vmul.f32 1.0, %v353
    %vm355 = vcmask 7168
    %356 = vst.msk [vmem:[%s7] sm:$0xff] %vm355, %v354
    // Predicated region
    $region38: #{tpu_custom_call.1} parent=1 // pred_check
      _
    $region39: #{tpu_custom_call.1} parent=1 // pred_check_branch
      %358 = sbr.rel (0) target = $region41
    $region40: #{tpu_custom_call.1} parent=1 // pred_region
      _
    $region41: #{tpu_custom_call.1} parent=1 // pred_fallthru
      _
    // Predicated region
    $region42: #{tpu_custom_call.1} parent=1 // pred_check
      _
    $region43: #{tpu_custom_call.1} parent=1 // pred_check_branch
      %360 = sbr.rel (0) target = $region45
    $region44: #{tpu_custom_call.1} parent=1 // pred_region
      _
    $region45: #{tpu_custom_call.1} parent=1 // pred_fallthru
      _
    %361 = vsyncpa [#allocation4], 1
    %362 = vsyncpa [#allocation6], 1

// kernel: tpu_custom_call.1
$region0: #{tpu_custom_call.1}
  #allocation0 [shape = 'u32[]', space=smem, size = 0x4, offset = 0x4, fixed_abs, tag = 'smem constant byte address 0x4 - core index']
  #allocation1 [shape = 'u32[144,128]{1,0:T(1,128)}', space=vmem, size = 0x12000, scoped, tag = 'internal scratch']
  #allocation2 [shape = 'f32[1,1]{1,0:T(1,128)S(1)}', space=vmem, size = 0x200, scoped, tag = 'scoped memory for tpu_custom_call.1']
  %s0 = inlined_call_operand.hbm [shape: bf16[8,32], index: 0, kind: input, shape index: {}]
  %s1 = inlined_call_operand.vmem [shape: bf16[32,128], index: 1, kind: input, shape index: {}]
  %s2 = inlined_call_operand.hbm [shape: f32[1,128], index: 2, kind: input, shape index: {}]
  %s3 = inlined_call_operand.vmem [shape: bf16[128,128], index: 3, kind: input, shape index: {}]
  %s4 = inlined_call_operand.vmem [shape: f32[1,128], index: 4, kind: input, shape index: {}]
  %s5 = inlined_call_operand.vmem [shape: bf16[128,1], index: 5, kind: input, shape index: {}]
  %s6 = inlined_call_operand.<no memory space> [shape: f32[1,1], index: 6, kind: input, shape index: {}]
  %s7 = inlined_call_operand.vmem [shape: f32[8,1], index: 7, kind: output, shape index: {}]
  %s8 = sld [smem:[#allocation0]]
  $region46: #{tpu_custom_call.1} parent=0
    _
  %s10 = ssub.s32 1, %s8
  %s11 = scalar_select 0, %s10, %s8
  %v12 = vstv %s6
  %13 = vst [vmem:[#allocation2] sm:$0x1] %v12
  $region1: #{tpu_custom_call.1} parent=0
    #allocation3 [shape = 'u8[2048]{0}', space=vmem, size = 0x800, scoped, tag = 'input window, operand 0, single buffered']
    #allocation4 [shape = 's32[1]{0}', space=sflag, size = 0x4, scoped, tag = 'scoped memory for tpu_custom_call.1']
    #allocation5 [shape = 'u8[512]{0}', space=vmem, size = 0x400, scoped, tag = 'input window, operand 2, single buffered']
    #allocation6 [shape = 's32[1]{0}', space=sflag, size = 0x4, scoped, tag = 'scoped memory for tpu_custom_call.1']
    %14 = vsyncpa [#allocation4], 0
    %15 = vsyncpa [#allocation6], 0
    // Predicated region
    $region2: #{tpu_custom_call.1} parent=1 // pred_check
      _
    $region3: #{tpu_custom_call.1} parent=1 // pred_check_branch
      %17 = sbr.rel (0) target = $region5
    $region4: #{tpu_custom_call.1} parent=1 // pred_region
      %s19 = ssub.s32 64, 64
      %20 = vsyncadd [#allocation4], %s19
      %s22 = sshll.u32 [#allocation3], 4
      %s23 = int_to_ptr.vmem [resolvable:$true] %s22
      %25 = dma.hbm_to_vmem [thread:$0]  %s0, 64, %s23, [#allocation4]
    $region5: #{tpu_custom_call.1} parent=1 // pred_fallthru
      _
    // Predicated region
    $region6: #{tpu_custom_call.1} parent=1 // pred_check
      _
    $region7: #{tpu_custom_call.1} parent=1 // pred_check_branch
      %27 = sbr.rel (0) target = $region9
    $region8: #{tpu_custom_call.1} parent=1 // pred_region
      _
    $region9: #{tpu_custom_call.1} parent=1 // pred_fallthru
      _
    // Predicated region
    $region10: #{tpu_custom_call.1} parent=1 // pred_check
      _
    $region11: #{tpu_custom_call.1} parent=1 // pred_check_branch
      %29 = sbr.rel (0) target = $region13
    $region12: #{tpu_custom_call.1} parent=1 // pred_region
      %s31 = ssub.s32 16, 16
      %32 = vsyncadd [#allocation6], %s31
      %s34 = sshll.u32 [#allocation5], 4
      %s35 = int_to_ptr.vmem [resolvable:$true] %s34
      %37 = dma.hbm_to_vmem [thread:$0]  %s2, 16, %s35, [#allocation6]
    $region13: #{tpu_custom_call.1} parent=1 // pred_fallthru
      _
    // Predicated region
    $region14: #{tpu_custom_call.1} parent=1 // pred_check
      _
    $region15: #{tpu_custom_call.1} parent=1 // pred_check_branch
      %39 = sbr.rel (0) target = $region17
    $region16: #{tpu_custom_call.1} parent=1 // pred_region
      _
    $region17: #{tpu_custom_call.1} parent=1 // pred_fallthru
      _
    // Predicated region
    $region18: #{tpu_custom_call.1} parent=1 // pred_check
      _
    $region19: #{tpu_custom_call.1} parent=1 // pred_check_branch
      %41 = sbr.rel (0) target = $region21
    $region20: #{tpu_custom_call.1} parent=1 // pred_region
      _
    $region21: #{tpu_custom_call.1} parent=1 // pred_fallthru
      _
    // Predicated region
    $region22: #{tpu_custom_call.1} parent=1 // pred_check
      _
    $region23: #{tpu_custom_call.1} parent=1 // pred_check_branch
      %43 = sbr.rel (0) target = $region25
    $region24: #{tpu_custom_call.1} parent=1 // pred_region
      _
    $region25: #{tpu_custom_call.1} parent=1 // pred_fallthru
      _
    // Predicated region
    $region26: #{tpu_custom_call.1} parent=1 // pred_check
      _
    $region27: #{tpu_custom_call.1} parent=1 // pred_check_branch
      %45 = sbr.rel (0) target = $region29
    $region28: #{tpu_custom_call.1} parent=1 // pred_region
      _
    $region29: #{tpu_custom_call.1} parent=1 // pred_fallthru
      _
    // Predicated region
    $region30: #{tpu_custom_call.1} parent=1 // pred_check
      _
    $region31: #{tpu_custom_call.1} parent=1 // pred_check_branch
      %47 = sbr.rel (0) target = $region33
    $region32: #{tpu_custom_call.1} parent=1 // pred_region
      %48 = dma.done [#allocation4], 64
    $region33: #{tpu_custom_call.1} parent=1 // pred_fallthru
      _
    // Predicated region
    $region34: #{tpu_custom_call.1} parent=1 // pred_check
      _
    $region35: #{tpu_custom_call.1} parent=1 // pred_check_branch
      %50 = sbr.rel (0) target = $region37
    $region36: #{tpu_custom_call.1} parent=1 // pred_region
      %51 = dma.done [#allocation6], 16
    $region37: #{tpu_custom_call.1} parent=1 // pred_fallthru
      _
    %v53 = vld [vmem:[#allocation3] sm:$0xf]
    %v54 = vld [vmem:[%s1] sm:$0xf]
    %v55 = vld [vmem:[%s1 + $0x4] sm:$0xf]
    %v56 = vld [vmem:[%s1 + $0x8] sm:$0xf]
    %v57 = vld [vmem:[%s1 + $0xc] sm:$0xf]
    %v58 = vld [vmem:[#allocation5] sm:$0x1]
    %v60 = vlaneseq
    %v61 = vshrl.u32 %v60, 7
    %v62 = vsub.s32 0, %v61
    %v63 = vrot.slane %v58, %v62
    %v69 = vunpack.c.l.b16 %v54
    %v70 = vunpack.c.l.b16 %v55
    %v71 = vunpack.c.l.b16 %v56
    %v72 = vunpack.c.l.b16 %v57
    %v73 = vpack.c.b16 %v70, %v69
    %v74 = vpack.c.b16 %v72, %v71
    %vm77 = vcmask 261120
    %v79 = vsel %vm77, %v53, 0
    %81 = vmatprep.subr.bf16.mxu0 0
    %82 = vmatpush1.bf16.msra.mxu0 %v73
    %83 = vmatprep.subr.bf16.mxu0 0
    %84 = vmatpush1.bf16.msra.mxu0 %v74
    %85 = vmatprep.subr.bf16.mxu0 0
    %86 = vmatpush1.bf16.msra.mxu0 0
    %87 = vmatprep.subr.bf16.mxu0 0
    %88 = vmatpush1.bf16.msra.mxu0 0
    %89 = vmatprep.subr.bf16.mxu0 0
    %90 = vmatpush1.bf16.msra.mxu0 0
    %91 = vmatprep.subr.bf16.mxu0 0
    %92 = vmatpush1.bf16.msra.mxu0 0
    %93 = vmatprep.subr.bf16.mxu0 0
    %94 = vmatpush1.bf16.msra.mxu0 0
    %95 = vmatprep.subr.bf16.mxu0 0
    %96 = vmatpush1.bf16.msra.mxu0 0
    %97 = vmatprep.subr.bf16.mxu0 0
    %98 = vmatpush1.bf16.msra.mxu0 0
    %99 = vmatprep.subr.bf16.mxu0 0
    %100 = vmatpush1.bf16.msra.mxu0 0
    %101 = vmatprep.subr.bf16.mxu0 0
    %102 = vmatpush1.bf16.msra.mxu0 0
    %103 = vmatprep.subr.bf16.mxu0 0
    %104 = vmatpush1.bf16.msra.mxu0 0
    %105 = vmatprep.subr.bf16.mxu0 0
    %106 = vmatpush1.bf16.msra.mxu0 0
    %107 = vmatprep.subr.bf16.mxu0 0
    %108 = vmatpush1.bf16.msra.mxu0 0
    %109 = vmatprep.subr.bf16.mxu0 0
    %110 = vmatpush1.bf16.msra.mxu0 0
    %111 = vmatprep.subr.bf16.mxu0 0
    %112 = vmatpush1.bf16.msra.mxu0 0
    %113 = vmatprep.mubr.bf16.mxu0 0
    %114 = vmatmul.mubr.bf16.gmra.mrb[0].mxu0 %v79
    %v115 = vpop.f32.mrb[0].mxu0
    %v116 = vadd.f32 %v63, %v115
    %v117 = vpop.f32.mrb[0].mxu0
    %v118 = vpop.f32.mrb[0].mxu0
    %v119 = vpop.f32.mrb[0].mxu0
    %120 = vdwg.mxu0
    %v121 = vmul.f32 %v116, 0.2
    %v122 = vmax.f32 %v116, %v121
    %v123 = vld [vmem:[%s3] sm:$0xf]
    %v124 = vld [vmem:[%s3 + $0x4] sm:$0xf]
    %v125 = vld [vmem:[%s3 + $0x8] sm:$0xf]
    %v126 = vld [vmem:[%s3 + $0xc] sm:$0xf]
    %v127 = vld [vmem:[%s3 + $0x10] sm:$0xf]
    %v128 = vld [vmem:[%s3 + $0x14] sm:$0xf]
    %v129 = vld [vmem:[%s3 + $0x18] sm:$0xf]
    %v130 = vld [vmem:[%s3 + $0x1c] sm:$0xf]
    %v131 = vld [vmem:[%s3 + $0x20] sm:$0xf]
    %v132 = vld [vmem:[%s3 + $0x24] sm:$0xf]
    %v133 = vld [vmem:[%s3 + $0x28] sm:$0xf]
    %v134 = vld [vmem:[%s3 + $0x2c] sm:$0xf]
    %v135 = vld [vmem:[%s3 + $0x30] sm:$0xf]
    %v136 = vld [vmem:[%s3 + $0x34] sm:$0xf]
    %v137 = vld [vmem:[%s3 + $0x38] sm:$0xf]
    %v138 = vld [vmem:[%s3 + $0x3c] sm:$0xf]
    %v139 = vld [vmem:[%s4] sm:$0x1]
    %v140 = vpack.c.bf16 %v122, %v122
    %v142 = vlaneseq
    %v143 = vshrl.u32 %v142, 7
    %v144 = vsub.s32 0, %v143
    %v145 = vrot.slane %v139, %v144
    %v163 = vunpack.c.l.b16 %v123
    %v164 = vunpack.c.l.b16 %v124
    %v165 = vunpack.c.l.b16 %v125
    %v166 = vunpack.c.l.b16 %v126
    %v167 = vunpack.c.l.b16 %v127
    %v168 = vunpack.c.l.b16 %v128
    %v169 = vunpack.c.l.b16 %v129
    %v170 = vunpack.c.l.b16 %v130
    %v171 = vunpack.c.l.b16 %v131
    %v172 = vunpack.c.l.b16 %v132
    %v173 = vunpack.c.l.b16 %v133
    %v174 = vunpack.c.l.b16 %v134
    %v175 = vunpack.c.l.b16 %v135
    %v176 = vunpack.c.l.b16 %v136
    %v177 = vunpack.c.l.b16 %v137
    %v178 = vunpack.c.l.b16 %v138
    %v179 = vpack.c.b16 %v164, %v163
    %v180 = vpack.c.b16 %v166, %v165
    %v181 = vpack.c.b16 %v168, %v167
    %v182 = vpack.c.b16 %v170, %v169
    %v183 = vpack.c.b16 %v172, %v171
    %v184 = vpack.c.b16 %v174, %v173
    %v185 = vpack.c.b16 %v176, %v175
    %v186 = vpack.c.b16 %v178, %v177
    %195 = vmatprep.subr.bf16.mxu0 0
    %196 = vmatpush1.bf16.msra.mxu0 %v179
    %197 = vmatprep.subr.bf16.mxu0 0
    %198 = vmatpush1.bf16.msra.mxu0 %v180
    %199 = vmatprep.subr.bf16.mxu0 0
    %200 = vmatpush1.bf16.msra.mxu0 %v181
    %201 = vmatprep.subr.bf16.mxu0 0
    %202 = vmatpush1.bf16.msra.mxu0 %v182
    %203 = vmatprep.subr.bf16.mxu0 0
    %204 = vmatpush1.bf16.msra.mxu0 %v183
    %205 = vmatprep.subr.bf16.mxu0 0
    %206 = vmatpush1.bf16.msra.mxu0 %v184
    %207 = vmatprep.subr.bf16.mxu0 0
    %208 = vmatpush1.bf16.msra.mxu0 %v185
    %209 = vmatprep.subr.bf16.mxu0 0
    %210 = vmatpush1.bf16.msra.mxu0 %v186
    %211 = vmatprep.subr.bf16.mxu0 0
    %212 = vmatpush1.bf16.msra.mxu0 0
    %213 = vmatprep.subr.bf16.mxu0 0
    %214 = vmatpush1.bf16.msra.mxu0 0
    %215 = vmatprep.subr.bf16.mxu0 0
    %216 = vmatpush1.bf16.msra.mxu0 0
    %217 = vmatprep.subr.bf16.mxu0 0
    %218 = vmatpush1.bf16.msra.mxu0 0
    %219 = vmatprep.subr.bf16.mxu0 0
    %220 = vmatpush1.bf16.msra.mxu0 0
    %221 = vmatprep.subr.bf16.mxu0 0
    %222 = vmatpush1.bf16.msra.mxu0 0
    %223 = vmatprep.subr.bf16.mxu0 0
    %224 = vmatpush1.bf16.msra.mxu0 0
    %225 = vmatprep.subr.bf16.mxu0 0
    %226 = vmatpush1.bf16.msra.mxu0 0
    %227 = vmatprep.mubr.bf16.mxu0 0
    %228 = vmatmul.mubr.bf16.gmra.mrb[0].mxu0 %v140
    %v229 = vpop.f32.mrb[0].mxu0
    %v230 = vadd.f32 %v145, %v229
    %v231 = vpop.f32.mrb[0].mxu0
    %v232 = vpop.f32.mrb[0].mxu0
    %v233 = vpop.f32.mrb[0].mxu0
    %234 = vdwg.mxu0
    %v235 = vmul.f32 %v230, 0.2
    %v236 = vmax.f32 %v230, %v235
    %v237 = vld [vmem:[%s5] sm:$0xf]
    %v238 = vld [vmem:[%s5 + $0x4] sm:$0xf]
    %v239 = vld [vmem:[%s5 + $0x8] sm:$0xf]
    %v240 = vld [vmem:[%s5 + $0xc] sm:$0xf]
    %v241 = vld [vmem:[%s5 + $0x10] sm:$0xf]
    %v242 = vld [vmem:[%s5 + $0x14] sm:$0xf]
    %v243 = vld [vmem:[%s5 + $0x18] sm:$0xf]
    %v244 = vld [vmem:[%s5 + $0x1c] sm:$0xf]
    %v245 = vld [vmem:[%s5 + $0x20] sm:$0xf]
    %v246 = vld [vmem:[%s5 + $0x24] sm:$0xf]
    %v247 = vld [vmem:[%s5 + $0x28] sm:$0xf]
    %v248 = vld [vmem:[%s5 + $0x2c] sm:$0xf]
    %v249 = vld [vmem:[%s5 + $0x30] sm:$0xf]
    %v250 = vld [vmem:[%s5 + $0x34] sm:$0xf]
    %v251 = vld [vmem:[%s5 + $0x38] sm:$0xf]
    %v252 = vld [vmem:[%s5 + $0x3c] sm:$0xf]
    %v253 = vld [vmem:[#allocation2] sm:$0x1]
    %v254 = vpack.c.bf16 %v236, %v236
    %v256 = vlaneseq
    %v257 = vshrl.u32 %v256, 7
    %v258 = vsub.s32 0, %v257
    %v259 = vrot.slane %v253, %v258
    %v277 = vunpack.c.l.b16 %v237
    %v278 = vunpack.c.l.b16 %v238
    %v279 = vunpack.c.l.b16 %v239
    %v280 = vunpack.c.l.b16 %v240
    %v281 = vunpack.c.l.b16 %v241
    %v282 = vunpack.c.l.b16 %v242
    %v283 = vunpack.c.l.b16 %v243
    %v284 = vunpack.c.l.b16 %v244
    %v285 = vunpack.c.l.b16 %v245
    %v286 = vunpack.c.l.b16 %v246
    %v287 = vunpack.c.l.b16 %v247
    %v288 = vunpack.c.l.b16 %v248
    %v289 = vunpack.c.l.b16 %v249
    %v290 = vunpack.c.l.b16 %v250
    %v291 = vunpack.c.l.b16 %v251
    %v292 = vunpack.c.l.b16 %v252
    %v293 = vpack.c.b16 %v278, %v277
    %v294 = vpack.c.b16 %v280, %v279
    %v295 = vpack.c.b16 %v282, %v281
    %v296 = vpack.c.b16 %v284, %v283
    %v297 = vpack.c.b16 %v286, %v285
    %v298 = vpack.c.b16 %v288, %v287
    %v299 = vpack.c.b16 %v290, %v289
    %v300 = vpack.c.b16 %v292, %v291
    %309 = vmatprep.subr.bf16.mxu0 0
    %310 = vmatpush1.bf16.msra.mxu0 %v293
    %311 = vmatprep.subr.bf16.mxu0 0
    %312 = vmatpush1.bf16.msra.mxu0 %v294
    %313 = vmatprep.subr.bf16.mxu0 0
    %314 = vmatpush1.bf16.msra.mxu0 %v295
    %315 = vmatprep.subr.bf16.mxu0 0
    %316 = vmatpush1.bf16.msra.mxu0 %v296
    %317 = vmatprep.subr.bf16.mxu0 0
    %318 = vmatpush1.bf16.msra.mxu0 %v297
    %319 = vmatprep.subr.bf16.mxu0 0
    %320 = vmatpush1.bf16.msra.mxu0 %v298
    %321 = vmatprep.subr.bf16.mxu0 0
    %322 = vmatpush1.bf16.msra.mxu0 %v299
    %323 = vmatprep.subr.bf16.mxu0 0
    %324 = vmatpush1.bf16.msra.mxu0 %v300
    %325 = vmatprep.subr.bf16.mxu0 0
    %326 = vmatpush1.bf16.msra.mxu0 0
    %327 = vmatprep.subr.bf16.mxu0 0
    %328 = vmatpush1.bf16.msra.mxu0 0
    %329 = vmatprep.subr.bf16.mxu0 0
    %330 = vmatpush1.bf16.msra.mxu0 0
    %331 = vmatprep.subr.bf16.mxu0 0
    %332 = vmatpush1.bf16.msra.mxu0 0
    %333 = vmatprep.subr.bf16.mxu0 0
    %334 = vmatpush1.bf16.msra.mxu0 0
    %335 = vmatprep.subr.bf16.mxu0 0
    %336 = vmatpush1.bf16.msra.mxu0 0
    %337 = vmatprep.subr.bf16.mxu0 0
    %338 = vmatpush1.bf16.msra.mxu0 0
    %339 = vmatprep.subr.bf16.mxu0 0
    %340 = vmatpush1.bf16.msra.mxu0 0
    %341 = vmatprep.mubr.bf16.mxu0 0
    %342 = vmatmul.mubr.bf16.gmra.mrb[0].mxu0 %v254
    %v343 = vpop.f32.mrb[0].mxu0
    %v344 = vadd.f32 %v259, %v343
    %v345 = vpop.f32.mrb[0].mxu0
    %v346 = vpop.f32.mrb[0].mxu0
    %v347 = vpop.f32.mrb[0].mxu0
    %348 = vdwg.mxu0
    %v349 = vsub.f32 0.0, %v344
    %v350 = vmul.f32 %v349, 1.442695
    %v351 = vpow.pop %v350
    %v352 = vadd.f32 %v351, 1.0
    %v353 = vrcp.pop %v352
    %v354 = vmul.f32 1.0, %v353
    %vm355 = vcmask 7168
    %356 = vst.msk [vmem:[%s7] sm:$0xff] %vm355, %v354
    // Predicated region
    $region38: #{tpu_custom_call.1} parent=1 // pred_check
      _
    $region39: #{tpu_custom_call.1} parent=1 // pred_check_branch
      %358 = sbr.rel (0) target = $region41
    $region40: #{tpu_custom_call.1} parent=1 // pred_region
      _
    $region41: #{tpu_custom_call.1} parent=1 // pred_fallthru
      _
    // Predicated region
    $region42: #{tpu_custom_call.1} parent=1 // pred_check
      _
    $region43: #{tpu_custom_call.1} parent=1 // pred_check_branch
      %360 = sbr.rel (0) target = $region45
    $region44: #{tpu_custom_call.1} parent=1 // pred_region
      _
    $region45: #{tpu_custom_call.1} parent=1 // pred_fallthru
      _
    %361 = vsyncpa [#allocation4], 1
    %362 = vsyncpa [#allocation6], 1

</llo_original>
